<compile_context>
chip_gen: v7x
topology: tpu7x:2x2x1
jax: 0.10.0
libtpu: 0.0.40
codegen_flags: <defaults>
</compile_context>

<pallas_src>
import jax
import jax.numpy as jnp
import numpy as np
from jax.experimental import pallas as pl
from jax.experimental.pallas import tpu as pltpu


def _round_up(v, mult):
    return ((v + mult - 1) // mult) * mult


def vae_kernel(
    x_ref,                    # (TB, m_pad)            f32
    we1_ref, be1_ref,         # (m_pad, h_pad) bf16 / (1, h_pad) f32
    wenc_ref, benc_ref,       # (h_pad, enc_w) bf16 / (1, enc_w) f32   [mu | logvar]
    wd1_ref, bd1_ref,         # (enc_w, h_pad) bf16 / (1, h_pad) f32   (zero rows on logvar lanes)
    wdec_ref, bdec_ref,       # (h_pad, dec_w) bf16 / (1, dec_w) f32   [x_recon | logs2 | 0...]
    enc_ref,                  # (TB, enc_w)            f32 out
    dec_ref,                  # (TB, dec_w)            f32 out
):
    xb = x_ref[...].astype(jnp.bfloat16)

    # ---- Encoder ----
    h = jnp.tanh(
        jnp.dot(xb, we1_ref[...], preferred_element_type=jnp.float32) + be1_ref[...]
    )
    enc = (
        jnp.dot(h.astype(jnp.bfloat16), wenc_ref[...],
                preferred_element_type=jnp.float32)
        + benc_ref[...]
    )
    enc_ref[...] = enc  # lane-dense [mu | logvar] slab

    # ---- Latent (eval mode): latent = mu ----
    # wd1_ref has zero rows on the logvar / padding lanes, so enc @ wd1 == mu @ wd1
    # exactly; no sub-lane slice needed.
    # TODO(synk): training-mode reparameterization (pltpu.prng_seed +
    # pltpu.stateful_normal; latent = mu + eps * exp(0.5 * logvar)).

    # ---- Decoder (fit_s2=True) ----
    h2 = jnp.tanh(
        jnp.dot(enc.astype(jnp.bfloat16), wd1_ref[...],
                preferred_element_type=jnp.float32)
        + bd1_ref[...]
    )
    dec_ref[...] = (
        jnp.dot(h2.astype(jnp.bfloat16), wdec_ref[...],
                preferred_element_type=jnp.float32)
        + bdec_ref[...]
    )  # lane-dense [x_recon | logs2] slab


def prepare_vae_params(params):
    """One-time weight packing (pad + head-fusion + bf16 cast). Hoisted out of
    the forward so per-call HBM traffic is only x + outputs + resident weights."""
    m, hidden = params["we1"].shape
    n = params["wmu"].shape[1]

    m_pad = _round_up(m, 128)
    h_pad = _round_up(hidden, 128)
    enc_w = _round_up(2 * n, 128)
    if m < m_pad:                      # logs2 fits in wd2's padding lanes
        dec_w, s2_off = m_pad, m
    else:                              # m already lane-aligned: need one extra block
        dec_w, s2_off = m_pad + 128, m_pad

    wdt, bdt = jnp.bfloat16, jnp.float32

    def pad2(a, rows, cols, dtype):
        r, c = a.shape
        return jnp.pad(a, ((0, rows - r), (0, cols - c))).astype(dtype)

    we1 = pad2(params["we1"], m_pad, h_pad, wdt)
    be1 = pad2(params["be1"], 1, h_pad, bdt)
    # Fused encoder heads, packed contiguously: lanes [0:n]=mu, [n:2n]=logvar.
    wenc = pad2(jnp.concatenate([params["wmu"], params["wlv"]], axis=1),
                h_pad, enc_w, wdt)
    benc = pad2(jnp.concatenate([params["bmu"], params["blv"]], axis=1),
                1, enc_w, bdt)
    # Decoder first layer, row-packed to the enc slab (rows [0:n]=wd1, rest 0).
    wd1 = pad2(params["wd1"], enc_w, h_pad, wdt)
    bd1 = pad2(params["bd1"], 1, h_pad, bdt)
    # Fused decoder heads: lanes [0:m]=x_recon, lane s2_off=logs2.
    wdec = pad2(jnp.concatenate([params["wd2"], params["ws2"]], axis=1),
                h_pad, dec_w, wdt)
    bdec = pad2(jnp.concatenate([params["bd2"], params["bs2"]], axis=1),
                1, dec_w, bdt)

    weights = (we1, be1, wenc, benc, wd1, bd1, wdec, bdec)
    meta = dict(m=m, n=n, hidden=hidden, m_pad=m_pad, h_pad=h_pad,
                enc_w=enc_w, dec_w=dec_w, s2_off=s2_off)
    return weights, meta


def vae_forward(x, packed, *, tb_max=512):
    weights, meta = packed
    B, m = x.shape
    assert m == meta["m"]
    m_pad, h_pad = meta["m_pad"], meta["h_pad"]
    enc_w, dec_w = meta["enc_w"], meta["dec_w"]
    n, s2_off = meta["n"], meta["s2_off"]

    # Batch tile: multiple of 16 (bf16 sublane-dense), minimal over-padding,
    # and >= 2 grid steps when B permits so megacore ("parallel") helps on v7x.
    nt = max(pl.cdiv(B, tb_max), 2 if B > 16 else 1)
    TB = _round_up(pl.cdiv(B, nt), 16)
    B_pad = _round_up(B, TB)

    x_p = jnp.pad(x, ((0, B_pad - B), (0, m_pad - m))).astype(jnp.float32)

    def resident(a):
        # Constant block index: DMA'd once, stays VMEM-resident across grid steps.
        # (If hidden/m grow, add pipeline_mode=pl.Buffered(1) here to single-buffer.)
        return pl.BlockSpec(a.shape, lambda i: (0, 0))

    in_specs = [pl.BlockSpec((TB, m_pad), lambda i: (i, 0))] + [
        resident(a) for a in weights
    ]
    out_specs = (
        pl.BlockSpec((TB, enc_w), lambda i: (i, 0)),
        pl.BlockSpec((TB, dec_w), lambda i: (i, 0)),
    )
    # Outputs kept f32 for accuracy; switch to bf16 here (+ .astype at the two
    # stores) if downstream tolerates it — the kernel is HBM-write-bound.
    out_shape = (
        jax.ShapeDtypeStruct((B_pad, enc_w), jnp.float32),
        jax.ShapeDtypeStruct((B_pad, dec_w), jnp.float32),
    )

    flops = 2 * B_pad * (m_pad * h_pad + h_pad * enc_w + enc_w * h_pad + h_pad * dec_w)
    bytes_accessed = (
        int(x_p.size) * 4
        + sum(int(a.size) * a.dtype.itemsize for a in weights)
        + (B_pad * enc_w + B_pad * dec_w) * 4
    )
    cost = pl.CostEstimate(flops=flops,
                           transcendentals=2 * B_pad * h_pad,
                           bytes_accessed=bytes_accessed)

    enc, dec = pl.pallas_call(
        vae_kernel,
        out_shape=out_shape,
        grid=(B_pad // TB,),
        in_specs=in_specs,
        out_specs=out_specs,
        compiler_params=pltpu.CompilerParams(
            dimension_semantics=("parallel",),   # megacore sharding on v7x
            vmem_limit_bytes=32 * 1024 * 1024,   # safe on v5e / v6e / v7x; usage << limit
        ),
        cost_estimate=cost,
    )(x_p, *weights)

    # Slabs are only ~128 lanes wide now, so these slices are cheap.
    mu = enc[:B, :n]
    logvar = enc[:B, n:2 * n]
    x_recon = dec[:B, :m]
    logs2 = dec[:B, s2_off:s2_off + 1]
    return x_recon, logs2, mu, logvar


def init_params(key, m, n, hidden):
    ks = jax.random.split(key, 6)

    def lin(k, fan_in, fan_out):
        w = jax.random.normal(k, (fan_in, fan_out), jnp.float32) / np.sqrt(fan_in)
        b = jnp.zeros((1, fan_out), jnp.float32)
        return w, b

    we1, be1 = lin(ks[0], m, hidden)
    wmu, bmu = lin(ks[1], hidden, n)
    wlv, blv = lin(ks[2], hidden, n)
    wd1, bd1 = lin(ks[3], n, hidden)
    wd2, bd2 = lin(ks[4], hidden, m)
    ws2, bs2 = lin(ks[5], hidden, 1)
    return dict(we1=we1, be1=be1, wmu=wmu, bmu=bmu, wlv=wlv, blv=blv,
                wd1=wd1, bd1=bd1, wd2=wd2, bd2=bd2, ws2=ws2, bs2=bs2)


def vae_forward_ref(x, p):
    # Pure f32 JAX reference matching the PyTorch eval-mode forward.
    h = jnp.tanh(x @ p["we1"] + p["be1"])
    mu = h @ p["wmu"] + p["bmu"]
    logvar = h @ p["wlv"] + p["blv"]
    h2 = jnp.tanh(mu @ p["wd1"] + p["bd1"])
    x_recon = h2 @ p["wd2"] + p["bd2"]
    logs2 = h2 @ p["ws2"] + p["bs2"]
    return x_recon, logs2, mu, logvar


if __name__ == "__main__":
    B, m, n, hidden = 8, 16, 4, 32
    key = jax.random.PRNGKey(0)
    kx, kp = jax.random.split(key)
    x = jax.random.normal(kx, (B, m), jnp.float32)
    params = init_params(kp, m, n, hidden)

    packed = prepare_vae_params(params)          # one-time weight packing
    outs = jax.block_until_ready(vae_forward(x, packed))
    refs = vae_forward_ref(x, params)

    # Kernel uses bf16 weights/activations with f32 accumulation -> compare with
    # a tolerance that covers bf16 quantization of the O(1) intermediates.
    for o, r in zip(outs, refs):
        assert o.shape == r.shape and o.dtype == r.dtype
        if not jnp.allclose(o, r, atol=3e-2, rtol=3e-2):
            raise AssertionError("Pallas kernel mismatch vs JAX reference")

    print("KERNEL_OK")
</pallas_src>

<mosaic_0001>
module attributes {stable_mosaic.version = 11 : i64} {
  func.func @vae_kernel(%arg0: i32, %arg1: memref<16x128xf32, #tpu.memory_space<vmem>>, %arg2: memref<128x128xbf16, #tpu.memory_space<vmem>>, %arg3: memref<1x128xf32, #tpu.memory_space<vmem>>, %arg4: memref<128x128xbf16, #tpu.memory_space<vmem>>, %arg5: memref<1x128xf32, #tpu.memory_space<vmem>>, %arg6: memref<128x128xbf16, #tpu.memory_space<vmem>>, %arg7: memref<1x128xf32, #tpu.memory_space<vmem>>, %arg8: memref<128x128xbf16, #tpu.memory_space<vmem>>, %arg9: memref<1x128xf32, #tpu.memory_space<vmem>>, %arg10: memref<16x128xf32, #tpu.memory_space<vmem>>, %arg11: memref<16x128xf32, #tpu.memory_space<vmem>>) attributes {dimension_semantics = [#tpu.dimension_semantics<parallel>], iteration_bounds = array<i64: 1>, scalar_prefetch = 0 : i64, scratch_operands = 0 : i64, tpu.core_type = #tpu.core_type<tc>, window_params = [{transform_indices = @transform_0, window_bounds = array<i64: 16, 128>}, {pipeline_mode = #tpu.pipeline_mode<synchronous>, transform_indices = @transform_1, window_bounds = array<i64: 128, 128>}, {pipeline_mode = #tpu.pipeline_mode<synchronous>, transform_indices = @transform_2, window_bounds = array<i64: 1, 128>}, {pipeline_mode = #tpu.pipeline_mode<synchronous>, transform_indices = @transform_3, window_bounds = array<i64: 128, 128>}, {pipeline_mode = #tpu.pipeline_mode<synchronous>, transform_indices = @transform_4, window_bounds = array<i64: 1, 128>}, {pipeline_mode = #tpu.pipeline_mode<synchronous>, transform_indices = @transform_5, window_bounds = array<i64: 128, 128>}, {pipeline_mode = #tpu.pipeline_mode<synchronous>, transform_indices = @transform_6, window_bounds = array<i64: 1, 128>}, {pipeline_mode = #tpu.pipeline_mode<synchronous>, transform_indices = @transform_7, window_bounds = array<i64: 128, 128>}, {pipeline_mode = #tpu.pipeline_mode<synchronous>, transform_indices = @transform_8, window_bounds = array<i64: 1, 128>}, {transform_indices = @transform_9, window_bounds = array<i64: 16, 128>}, {transform_indices = @transform_10, window_bounds = array<i64: 16, 128>}]} {
    %c0 = arith.constant 0 : index
    %c0_0 = arith.constant 0 : index
    %0 = vector.load %arg1[%c0, %c0_0] : memref<16x128xf32, #tpu.memory_space<vmem>>, vector<16x128xf32>
    %1 = arith.truncf %0 : vector<16x128xf32> to vector<16x128xbf16>
    %c0_1 = arith.constant 0 : index
    %c0_2 = arith.constant 0 : index
    %2 = vector.load %arg2[%c0_1, %c0_2] : memref<128x128xbf16, #tpu.memory_space<vmem>>, vector<128x128xbf16>
    %cst = arith.constant dense<0.000000e+00> : vector<16x128xf32>
    %3 = tpu.matmul %1, %2, %cst {dimension_numbers = #tpu.dot_dimension_numbers<[1], [0], [0], [1], [0, 0, 1, 1], [], []>} : vector<16x128xbf16>, vector<128x128xbf16>, vector<16x128xf32> -> vector<16x128xf32>
    %c0_3 = arith.constant 0 : index
    %c0_4 = arith.constant 0 : index
    %4 = vector.load %arg3[%c0_3, %c0_4] : memref<1x128xf32, #tpu.memory_space<vmem>>, vector<1x128xf32>
    %5 = vector.broadcast %4 : vector<1x128xf32> to vector<16x128xf32>
    %6 = arith.addf %3, %5 : vector<16x128xf32>
    %7 = math.tanh %6 : vector<16x128xf32>
    %8 = arith.truncf %7 : vector<16x128xf32> to vector<16x128xbf16>
    %c0_5 = arith.constant 0 : index
    %c0_6 = arith.constant 0 : index
    %9 = vector.load %arg4[%c0_5, %c0_6] : memref<128x128xbf16, #tpu.memory_space<vmem>>, vector<128x128xbf16>
    %cst_7 = arith.constant dense<0.000000e+00> : vector<16x128xf32>
    %10 = tpu.matmul %8, %9, %cst_7 {dimension_numbers = #tpu.dot_dimension_numbers<[1], [0], [0], [1], [0, 0, 1, 1], [], []>} : vector<16x128xbf16>, vector<128x128xbf16>, vector<16x128xf32> -> vector<16x128xf32>
    %c0_8 = arith.constant 0 : index
    %c0_9 = arith.constant 0 : index
    %11 = vector.load %arg5[%c0_8, %c0_9] : memref<1x128xf32, #tpu.memory_space<vmem>>, vector<1x128xf32>
    %12 = vector.broadcast %11 : vector<1x128xf32> to vector<16x128xf32>
    %13 = arith.addf %10, %12 : vector<16x128xf32>
    %c0_10 = arith.constant 0 : index
    %c0_11 = arith.constant 0 : index
    %14 = vector.load %arg10[%c0_10, %c0_11] : memref<16x128xf32, #tpu.memory_space<vmem>>, vector<16x128xf32>
    tpu.vector_store %arg10[%c0_10, %c0_11], %13 {strides = array<i32>} : memref<16x128xf32, #tpu.memory_space<vmem>>, vector<16x128xf32>,
    %15 = arith.truncf %13 : vector<16x128xf32> to vector<16x128xbf16>
    %c0_12 = arith.constant 0 : index
    %c0_13 = arith.constant 0 : index
    %16 = vector.load %arg6[%c0_12, %c0_13] : memref<128x128xbf16, #tpu.memory_space<vmem>>, vector<128x128xbf16>
    %cst_14 = arith.constant dense<0.000000e+00> : vector<16x128xf32>
    %17 = tpu.matmul %15, %16, %cst_14 {dimension_numbers = #tpu.dot_dimension_numbers<[1], [0], [0], [1], [0, 0, 1, 1], [], []>} : vector<16x128xbf16>, vector<128x128xbf16>, vector<16x128xf32> -> vector<16x128xf32>
    %c0_15 = arith.constant 0 : index
    %c0_16 = arith.constant 0 : index
    %18 = vector.load %arg7[%c0_15, %c0_16] : memref<1x128xf32, #tpu.memory_space<vmem>>, vector<1x128xf32>
    %19 = vector.broadcast %18 : vector<1x128xf32> to vector<16x128xf32>
    %20 = arith.addf %17, %19 : vector<16x128xf32>
    %21 = math.tanh %20 : vector<16x128xf32>
    %22 = arith.truncf %21 : vector<16x128xf32> to vector<16x128xbf16>
    %c0_17 = arith.constant 0 : index
    %c0_18 = arith.constant 0 : index
    %23 = vector.load %arg8[%c0_17, %c0_18] : memref<128x128xbf16, #tpu.memory_space<vmem>>, vector<128x128xbf16>
    %cst_19 = arith.constant dense<0.000000e+00> : vector<16x128xf32>
    %24 = tpu.matmul %22, %23, %cst_19 {dimension_numbers = #tpu.dot_dimension_numbers<[1], [0], [0], [1], [0, 0, 1, 1], [], []>} : vector<16x128xbf16>, vector<128x128xbf16>, vector<16x128xf32> -> vector<16x128xf32>
    %c0_20 = arith.constant 0 : index
    %c0_21 = arith.constant 0 : index
    %25 = vector.load %arg9[%c0_20, %c0_21] : memref<1x128xf32, #tpu.memory_space<vmem>>, vector<1x128xf32>
    %26 = vector.broadcast %25 : vector<1x128xf32> to vector<16x128xf32>
    %27 = arith.addf %24, %26 : vector<16x128xf32>
    %c0_22 = arith.constant 0 : index
    %c0_23 = arith.constant 0 : index
    %28 = vector.load %arg11[%c0_22, %c0_23] : memref<16x128xf32, #tpu.memory_space<vmem>>, vector<16x128xf32>
    tpu.vector_store %arg11[%c0_22, %c0_23], %27 {strides = array<i32>} : memref<16x128xf32, #tpu.memory_space<vmem>>, vector<16x128xf32>,
    return
  }
  func.func @transform_0(%arg0: i32) -> (i32, i32) {
    %c0_i32 = arith.constant 0 : i32
    %c0_i32_0 = arith.constant 0 : i32
    return %arg0, %c0_i32 : i32, i32
  }
  func.func @transform_1(%arg0: i32) -> (i32, i32) {
    %c0_i32 = arith.constant 0 : i32
    %c0_i32_0 = arith.constant 0 : i32
    %c0_i32_1 = arith.constant 0 : i32
    return %c0_i32, %c0_i32_0 : i32, i32
  }
  func.func @transform_2(%arg0: i32) -> (i32, i32) {
    %c0_i32 = arith.constant 0 : i32
    %c0_i32_0 = arith.constant 0 : i32
    %c0_i32_1 = arith.constant 0 : i32
    return %c0_i32, %c0_i32_0 : i32, i32
  }
  func.func @transform_3(%arg0: i32) -> (i32, i32) {
    %c0_i32 = arith.constant 0 : i32
    %c0_i32_0 = arith.constant 0 : i32
    %c0_i32_1 = arith.constant 0 : i32
    return %c0_i32, %c0_i32_0 : i32, i32
  }
  func.func @transform_4(%arg0: i32) -> (i32, i32) {
    %c0_i32 = arith.constant 0 : i32
    %c0_i32_0 = arith.constant 0 : i32
    %c0_i32_1 = arith.constant 0 : i32
    return %c0_i32, %c0_i32_0 : i32, i32
  }
  func.func @transform_5(%arg0: i32) -> (i32, i32) {
    %c0_i32 = arith.constant 0 : i32
    %c0_i32_0 = arith.constant 0 : i32
    %c0_i32_1 = arith.constant 0 : i32
    return %c0_i32, %c0_i32_0 : i32, i32
  }
  func.func @transform_6(%arg0: i32) -> (i32, i32) {
    %c0_i32 = arith.constant 0 : i32
    %c0_i32_0 = arith.constant 0 : i32
    %c0_i32_1 = arith.constant 0 : i32
    return %c0_i32, %c0_i32_0 : i32, i32
  }
  func.func @transform_7(%arg0: i32) -> (i32, i32) {
    %c0_i32 = arith.constant 0 : i32
    %c0_i32_0 = arith.constant 0 : i32
    %c0_i32_1 = arith.constant 0 : i32
    return %c0_i32, %c0_i32_0 : i32, i32
  }
  func.func @transform_8(%arg0: i32) -> (i32, i32) {
    %c0_i32 = arith.constant 0 : i32
    %c0_i32_0 = arith.constant 0 : i32
    %c0_i32_1 = arith.constant 0 : i32
    return %c0_i32, %c0_i32_0 : i32, i32
  }
  func.func @transform_9(%arg0: i32) -> (i32, i32) {
    %c0_i32 = arith.constant 0 : i32
    %c0_i32_0 = arith.constant 0 : i32
    return %arg0, %c0_i32 : i32, i32
  }
  func.func @transform_10(%arg0: i32) -> (i32, i32) {
    %c0_i32 = arith.constant 0 : i32
    %c0_i32_0 = arith.constant 0 : i32
    return %arg0, %c0_i32 : i32, i32
  }
}

</mosaic_0001>

<llo_original>
// kernel: tpu_custom_call.1
$region0: #{tpu_custom_call.1}
  #allocation0 [shape = 'u32[]', space=smem, size = 0x4, offset = 0x4, fixed_abs, tag = 'smem constant byte address 0x4 - core index']
  #allocation1 [shape = 'u32[144,128]{1,0:T(1,128)}', space=vmem, size = 0x12000, scoped, tag = 'internal scratch']
  %s0 = inlined_call_operand.hbm [shape: f32[16,128], index: 0, kind: input, shape index: {}]
  %s1 = inlined_call_operand.hbm [shape: bf16[128,128], index: 1, kind: input, shape index: {}]
  %s2 = inlined_call_operand.vmem [shape: f32[1,128], index: 2, kind: input, shape index: {}]
  %s3 = inlined_call_operand.hbm [shape: bf16[128,128], index: 3, kind: input, shape index: {}]
  %s4 = inlined_call_operand.vmem [shape: f32[1,128], index: 4, kind: input, shape index: {}]
  %s5 = inlined_call_operand.hbm [shape: bf16[128,128], index: 5, kind: input, shape index: {}]
  %s6 = inlined_call_operand.vmem [shape: f32[1,128], index: 6, kind: input, shape index: {}]
  %s7 = inlined_call_operand.hbm [shape: bf16[128,128], index: 7, kind: input, shape index: {}]
  %s8 = inlined_call_operand.vmem [shape: f32[1,128], index: 8, kind: input, shape index: {}]
  %s9 = inlined_call_operand.hbm [shape: f32[16,128], index: 9, kind: output, shape index: {0}]
  %s10 = inlined_call_operand.hbm [shape: f32[16,128], index: 10, kind: output, shape index: {1}]
  %11 = xla_tuple %s9, %s10
  %s12 = sld [smem:[#allocation0]]
  $region74: #{tpu_custom_call.1} parent=0
    _
  %s14 = ssub.s32 1, %s12
  %s15 = scalar_select 0, %s14, %s12
  $region1: #{tpu_custom_call.1} parent=0
    #allocation2 [shape = 'u8[8192]{0}', space=vmem, size = 0x2000, scoped, tag = 'input window, operand 0, single buffered']
    #allocation3 [shape = 's32[1]{0}', space=sflag, size = 0x4, scoped, tag = 'scoped memory for tpu_custom_call.1']
    #allocation4 [shape = 's32[1]{0}', space=sflag, size = 0x4, scoped, tag = 'scoped memory for tpu_custom_call.1']
    #allocation5 [shape = 'u8[32768]{0}', space=vmem, size = 0x8000, scoped, tag = 'input window, operand 1, single buffered']
    #allocation6 [shape = 's32[1]{0}', space=sflag, size = 0x4, scoped, tag = 'scoped memory for tpu_custom_call.1']
    #allocation7 [shape = 'u8[32768]{0}', space=vmem, size = 0x8000, scoped, tag = 'input window, operand 3, single buffered']
    #allocation8 [shape = 'u8[32768]{0}', space=vmem, size = 0x8000, scoped, tag = 'input window, operand 5, single buffered']
    #allocation9 [shape = 's32[1]{0}', space=sflag, size = 0x4, scoped, tag = 'scoped memory for tpu_custom_call.1']
    #allocation10 [shape = 'u8[32768]{0}', space=vmem, size = 0x8000, scoped, tag = 'input window, operand 7, single buffered']
    #allocation11 [shape = 'u8[8192]{0}', space=vmem, size = 0x2000, scoped, tag = 'output window, operand 0, single buffered']
    #allocation12 [shape = 'u8[8192]{0}', space=vmem, size = 0x2000, scoped, tag = 'output window, operand 1, single buffered']
    #allocation13 [shape = 's32[1]{0}', space=sflag, size = 0x4, scoped, tag = 'scoped memory for tpu_custom_call.1']
    %16 = vsyncpa [#allocation3], 0
    %17 = vsyncpa [#allocation6], 0
    %18 = vsyncpa [#allocation9], 0
    %19 = vsyncpa [#allocation4], 0
    %20 = vsyncpa [#allocation13], 0
    // Predicated region
    $region2: #{tpu_custom_call.1} parent=1 // pred_check
      _
    $region3: #{tpu_custom_call.1} parent=1 // pred_check_branch
      %22 = sbr.rel (0) target = $region5
    $region4: #{tpu_custom_call.1} parent=1 // pred_region
      %s24 = ssub.s32 256, 256
      %25 = vsyncadd [#allocation3], %s24
      %s26 = sshll.u32 [#allocation2], 4
      %s27 = int_to_ptr.vmem [resolvable:$true] %s26
      %32 = dma.hbm_to_vmem [thread:$0]  %s0, 256, %s27, [#allocation3], 128, 128, 8
    $region5: #{tpu_custom_call.1} parent=1 // pred_fallthru
      _
    // Predicated region
    $region6: #{tpu_custom_call.1} parent=1 // pred_check
      _
    $region7: #{tpu_custom_call.1} parent=1 // pred_check_branch
      %34 = sbr.rel (0) target = $region9
    $region8: #{tpu_custom_call.1} parent=1 // pred_region
      %s36 = ssub.s32 1024, 1024
      %37 = vsyncadd [#allocation6], %s36
      %s38 = sshll.u32 [#allocation5], 4
      %s39 = int_to_ptr.vmem [resolvable:$true] %s38
      %44 = dma.hbm_to_vmem [thread:$0]  %s1, 1024, %s39, [#allocation6], 64, 64, 4
    $region9: #{tpu_custom_call.1} parent=1 // pred_fallthru
      _
    // Predicated region
    $region10: #{tpu_custom_call.1} parent=1 // pred_check
      _
    $region11: #{tpu_custom_call.1} parent=1 // pred_check_branch
      %46 = sbr.rel (0) target = $region13
    $region12: #{tpu_custom_call.1} parent=1 // pred_region
      _
    $region13: #{tpu_custom_call.1} parent=1 // pred_fallthru
      _
    // Predicated region
    $region14: #{tpu_custom_call.1} parent=1 // pred_check
      _
    $region15: #{tpu_custom_call.1} parent=1 // pred_check_branch
      %48 = sbr.rel (0) target = $region17
    $region16: #{tpu_custom_call.1} parent=1 // pred_region
      %s50 = ssub.s32 1024, 1024
      %51 = vsyncadd [#allocation6], %s50
      %s52 = sshll.u32 [#allocation7], 4
      %s53 = int_to_ptr.vmem [resolvable:$true] %s52
      %58 = dma.hbm_to_vmem [thread:$0]  %s3, 1024, %s53, [#allocation6], 64, 64, 4
    $region17: #{tpu_custom_call.1} parent=1 // pred_fallthru
      _
    // Predicated region
    $region18: #{tpu_custom_call.1} parent=1 // pred_check
      _
    $region19: #{tpu_custom_call.1} parent=1 // pred_check_branch
      %60 = sbr.rel (0) target = $region21
    $region20: #{tpu_custom_call.1} parent=1 // pred_region
      _
    $region21: #{tpu_custom_call.1} parent=1 // pred_fallthru
      _
    // Predicated region
    $region22: #{tpu_custom_call.1} parent=1 // pred_check
      _
    $region23: #{tpu_custom_call.1} parent=1 // pred_check_branch
      %62 = sbr.rel (0) target = $region25
    $region24: #{tpu_custom_call.1} parent=1 // pred_region
      %s64 = ssub.s32 1024, 1024
      %65 = vsyncadd [#allocation9], %s64
      %s66 = sshll.u32 [#allocation8], 4
      %s67 = int_to_ptr.vmem [resolvable:$true] %s66
      %72 = dma.hbm_to_vmem [thread:$0]  %s5, 1024, %s67, [#allocation9], 64, 64, 4
    $region25: #{tpu_custom_call.1} parent=1 // pred_fallthru
      _
    // Predicated region
    $region26: #{tpu_custom_call.1} parent=1 // pred_check
      _
    $region27: #{tpu_custom_call.1} parent=1 // pred_check_branch
      %74 = sbr.rel (0) target = $region29
    $region28: #{tpu_custom_call.1} parent=1 // pred_region
      _
    $region29: #{tpu_custom_call.1} parent=1 // pred_fallthru
      _
    // Predicated region
    $region30: #{tpu_custom_call.1} parent=1 // pred_check
      _
    $region31: #{tpu_custom_call.1} parent=1 // pred_check_branch
      %76 = sbr.rel (0) target = $region33
    $region32: #{tpu_custom_call.1} parent=1 // pred_region
      %s78 = ssub.s32 1024, 1024
      %79 = vsyncadd [#allocation9], %s78
      %s80 = sshll.u32 [#allocation10], 4
      %s81 = int_to_ptr.vmem [resolvable:$true] %s80
      %86 = dma.hbm_to_vmem [thread:$0]  %s7, 1024, %s81, [#allocation9], 64, 64, 4
    $region33: #{tpu_custom_call.1} parent=1 // pred_fallthru
      _
    // Predicated region
    $region34: #{tpu_custom_call.1} parent=1 // pred_check
      _
    $region35: #{tpu_custom_call.1} parent=1 // pred_check_branch
      %88 = sbr.rel (0) target = $region37
    $region36: #{tpu_custom_call.1} parent=1 // pred_region
      _
    $region37: #{tpu_custom_call.1} parent=1 // pred_fallthru
      _
    // Predicated region
    $region38: #{tpu_custom_call.1} parent=1 // pred_check
      _
    $region39: #{tpu_custom_call.1} parent=1 // pred_check_branch
      %90 = sbr.rel (0) target = $region41
    $region40: #{tpu_custom_call.1} parent=1 // pred_region
      %91 = dma.done [#allocation3], 256
    $region41: #{tpu_custom_call.1} parent=1 // pred_fallthru
      _
    // Predicated region
    $region42: #{tpu_custom_call.1} parent=1 // pred_check
      _
    $region43: #{tpu_custom_call.1} parent=1 // pred_check_branch
      %93 = sbr.rel (0) target = $region45
    $region44: #{tpu_custom_call.1} parent=1 // pred_region
      %94 = dma.done [#allocation6], 1024
    $region45: #{tpu_custom_call.1} parent=1 // pred_fallthru
      _
    // Predicated region
    $region46: #{tpu_custom_call.1} parent=1 // pred_check
      _
    $region47: #{tpu_custom_call.1} parent=1 // pred_check_branch
      %96 = sbr.rel (0) target = $region49
    $region48: #{tpu_custom_call.1} parent=1 // pred_region
      %97 = dma.done [#allocation6], 1024
    $region49: #{tpu_custom_call.1} parent=1 // pred_fallthru
      _
    // Predicated region
    $region50: #{tpu_custom_call.1} parent=1 // pred_check
      _
    $region51: #{tpu_custom_call.1} parent=1 // pred_check_branch
      %99 = sbr.rel (0) target = $region53
    $region52: #{tpu_custom_call.1} parent=1 // pred_region
      %100 = dma.done [#allocation9], 1024
    $region53: #{tpu_custom_call.1} parent=1 // pred_fallthru
      _
    // Predicated region
    $region54: #{tpu_custom_call.1} parent=1 // pred_check
      _
    $region55: #{tpu_custom_call.1} parent=1 // pred_check_branch
      %102 = sbr.rel (0) target = $region57
    $region56: #{tpu_custom_call.1} parent=1 // pred_region
      %103 = dma.done [#allocation9], 1024
    $region57: #{tpu_custom_call.1} parent=1 // pred_fallthru
      _
    %v105 = vld [vmem:[#allocation2] sm:$0xff]
    %v106 = vld [vmem:[#allocation2 + $0x8] sm:$0xff]
    %v107 = vpack.c.bf16 %v106, %v105
    %v108 = vld [vmem:[#allocation5] sm:$0xf]
    %v109 = vld [vmem:[#allocation5 + $0x4] sm:$0xf]
    %v110 = vld [vmem:[#allocation5 + $0x8] sm:$0xf]
    %v111 = vld [vmem:[#allocation5 + $0xc] sm:$0xf]
    %v112 = vld [vmem:[#allocation5 + $0x10] sm:$0xf]
    %v113 = vld [vmem:[#allocation5 + $0x14] sm:$0xf]
    %v114 = vld [vmem:[#allocation5 + $0x18] sm:$0xf]
    %v115 = vld [vmem:[#allocation5 + $0x1c] sm:$0xf]
    %v116 = vld [vmem:[#allocation5 + $0x20] sm:$0xf]
    %v117 = vld [vmem:[#allocation5 + $0x24] sm:$0xf]
    %v118 = vld [vmem:[#allocation5 + $0x28] sm:$0xf]
    %v119 = vld [vmem:[#allocation5 + $0x2c] sm:$0xf]
    %v120 = vld [vmem:[#allocation5 + $0x30] sm:$0xf]
    %v121 = vld [vmem:[#allocation5 + $0x34] sm:$0xf]
    %v122 = vld [vmem:[#allocation5 + $0x38] sm:$0xf]
    %v123 = vld [vmem:[#allocation5 + $0x3c] sm:$0xf]
    %v124 = vld [vmem:[%s2] sm:$0x1]
    %v126 = vlaneseq
    %v127 = vshrl.u32 %v126, 7
    %v128 = vsub.s32 0, %v127
    %v129 = vrot.slane %v124, %v128
    %v147 = vunpack.c.l.b16 %v108
    %v148 = vunpack.c.l.b16 %v109
    %v149 = vunpack.c.l.b16 %v110
    %v150 = vunpack.c.l.b16 %v111
    %v151 = vunpack.c.l.b16 %v112
    %v152 = vunpack.c.l.b16 %v113
    %v153 = vunpack.c.l.b16 %v114
    %v154 = vunpack.c.l.b16 %v115
    %v155 = vunpack.c.l.b16 %v116
    %v156 = vunpack.c.l.b16 %v117
    %v157 = vunpack.c.l.b16 %v118
    %v158 = vunpack.c.l.b16 %v119
    %v159 = vunpack.c.l.b16 %v120
    %v160 = vunpack.c.l.b16 %v121
    %v161 = vunpack.c.l.b16 %v122
    %v162 = vunpack.c.l.b16 %v123
    %v163 = vpack.c.b16 %v148, %v147
    %v164 = vpack.c.b16 %v150, %v149
    %v165 = vpack.c.b16 %v152, %v151
    %v166 = vpack.c.b16 %v154, %v153
    %v167 = vpack.c.b16 %v156, %v155
    %v168 = vpack.c.b16 %v158, %v157
    %v169 = vpack.c.b16 %v160, %v159
    %v170 = vpack.c.b16 %v162, %v161
    %179 = vmatprep.subr.bf16.mxu0 0
    %180 = vmatpush1.bf16.msra.mxu0 %v163
    %181 = vmatprep.subr.bf16.mxu0 0
    %182 = vmatpush1.bf16.msra.mxu0 %v164
    %183 = vmatprep.subr.bf16.mxu0 0
    %184 = vmatpush1.bf16.msra.mxu0 %v165
    %185 = vmatprep.subr.bf16.mxu0 0
    %186 = vmatpush1.bf16.msra.mxu0 %v166
    %187 = vmatprep.subr.bf16.mxu0 0
    %188 = vmatpush1.bf16.msra.mxu0 %v167
    %189 = vmatprep.subr.bf16.mxu0 0
    %190 = vmatpush1.bf16.msra.mxu0 %v168
    %191 = vmatprep.subr.bf16.mxu0 0
    %192 = vmatpush1.bf16.msra.mxu0 %v169
    %193 = vmatprep.subr.bf16.mxu0 0
    %194 = vmatpush1.bf16.msra.mxu0 %v170
    %195 = vmatprep.subr.bf16.mxu0 0
    %196 = vmatpush1.bf16.msra.mxu0 0
    %197 = vmatprep.subr.bf16.mxu0 0
    %198 = vmatpush1.bf16.msra.mxu0 0
    %199 = vmatprep.subr.bf16.mxu0 0
    %200 = vmatpush1.bf16.msra.mxu0 0
    %201 = vmatprep.subr.bf16.mxu0 0
    %202 = vmatpush1.bf16.msra.mxu0 0
    %203 = vmatprep.subr.bf16.mxu0 0
    %204 = vmatpush1.bf16.msra.mxu0 0
    %205 = vmatprep.subr.bf16.mxu0 0
    %206 = vmatpush1.bf16.msra.mxu0 0
    %207 = vmatprep.subr.bf16.mxu0 0
    %208 = vmatpush1.bf16.msra.mxu0 0
    %209 = vmatprep.subr.bf16.mxu0 0
    %210 = vmatpush1.bf16.msra.mxu0 0
    %211 = vmatprep.mubr.bf16.mxu0 0
    %212 = vmatmul.mubr.bf16.gmra.mrb[0].mxu0 %v107
    %v213 = vpop.f32.mrb[0].mxu0
    %v214 = vadd.f32 %v129, %v213
    %v215 = vpop.f32.mrb[0].mxu0
    %v216 = vpop.f32.mrb[0].mxu0
    %v217 = vadd.f32 %v129, %v216
    %v218 = vpop.f32.mrb[0].mxu0
    %219 = vdwg.mxu0
    %v220 = vtanh.pop %v214
    %v221 = vtanh.pop %v217
    %v222 = vpack.c.bf16 %v221, %v220
    %v223 = vld [vmem:[#allocation7] sm:$0xf]
    %v224 = vld [vmem:[#allocation7 + $0x4] sm:$0xf]
    %v225 = vld [vmem:[#allocation7 + $0x8] sm:$0xf]
    %v226 = vld [vmem:[#allocation7 + $0xc] sm:$0xf]
    %v227 = vld [vmem:[#allocation7 + $0x10] sm:$0xf]
    %v228 = vld [vmem:[#allocation7 + $0x14] sm:$0xf]
    %v229 = vld [vmem:[#allocation7 + $0x18] sm:$0xf]
    %v230 = vld [vmem:[#allocation7 + $0x1c] sm:$0xf]
    %v231 = vld [vmem:[#allocation7 + $0x20] sm:$0xf]
    %v232 = vld [vmem:[#allocation7 + $0x24] sm:$0xf]
    %v233 = vld [vmem:[#allocation7 + $0x28] sm:$0xf]
    %v234 = vld [vmem:[#allocation7 + $0x2c] sm:$0xf]
    %v235 = vld [vmem:[#allocation7 + $0x30] sm:$0xf]
    %v236 = vld [vmem:[#allocation7 + $0x34] sm:$0xf]
    %v237 = vld [vmem:[#allocation7 + $0x38] sm:$0xf]
    %v238 = vld [vmem:[#allocation7 + $0x3c] sm:$0xf]
    %v239 = vld [vmem:[%s4] sm:$0x1]
    %v241 = vlaneseq
    %v242 = vshrl.u32 %v241, 7
    %v243 = vsub.s32 0, %v242
    %v244 = vrot.slane %v239, %v243
    %v262 = vunpack.c.l.b16 %v223
    %v263 = vunpack.c.l.b16 %v224
    %v264 = vunpack.c.l.b16 %v225
    %v265 = vunpack.c.l.b16 %v226
    %v266 = vunpack.c.l.b16 %v227
    %v267 = vunpack.c.l.b16 %v228
    %v268 = vunpack.c.l.b16 %v229
    %v269 = vunpack.c.l.b16 %v230
    %v270 = vunpack.c.l.b16 %v231
    %v271 = vunpack.c.l.b16 %v232
    %v272 = vunpack.c.l.b16 %v233
    %v273 = vunpack.c.l.b16 %v234
    %v274 = vunpack.c.l.b16 %v235
    %v275 = vunpack.c.l.b16 %v236
    %v276 = vunpack.c.l.b16 %v237
    %v277 = vunpack.c.l.b16 %v238
    %v278 = vpack.c.b16 %v263, %v262
    %v279 = vpack.c.b16 %v265, %v264
    %v280 = vpack.c.b16 %v267, %v266
    %v281 = vpack.c.b16 %v269, %v268
    %v282 = vpack.c.b16 %v271, %v270
    %v283 = vpack.c.b16 %v273, %v272
    %v284 = vpack.c.b16 %v275, %v274
    %v285 = vpack.c.b16 %v277, %v276
    %294 = vmatprep.subr.bf16.mxu0 0
    %295 = vmatpush1.bf16.msra.mxu0 %v278
    %296 = vmatprep.subr.bf16.mxu0 0
    %297 = vmatpush1.bf16.msra.mxu0 %v279
    %298 = vmatprep.subr.bf16.mxu0 0
    %299 = vmatpush1.bf16.msra.mxu0 %v280
    %300 = vmatprep.subr.bf16.mxu0 0
    %301 = vmatpush1.bf16.msra.mxu0 %v281
    %302 = vmatprep.subr.bf16.mxu0 0
    %303 = vmatpush1.bf16.msra.mxu0 %v282
    %304 = vmatprep.subr.bf16.mxu0 0
    %305 = vmatpush1.bf16.msra.mxu0 %v283
    %306 = vmatprep.subr.bf16.mxu0 0
    %307 = vmatpush1.bf16.msra.mxu0 %v284
    %308 = vmatprep.subr.bf16.mxu0 0
    %309 = vmatpush1.bf16.msra.mxu0 %v285
    %310 = vmatprep.subr.bf16.mxu0 0
    %311 = vmatpush1.bf16.msra.mxu0 0
    %312 = vmatprep.subr.bf16.mxu0 0
    %313 = vmatpush1.bf16.msra.mxu0 0
    %314 = vmatprep.subr.bf16.mxu0 0
    %315 = vmatpush1.bf16.msra.mxu0 0
    %316 = vmatprep.subr.bf16.mxu0 0
    %317 = vmatpush1.bf16.msra.mxu0 0
    %318 = vmatprep.subr.bf16.mxu0 0
    %319 = vmatpush1.bf16.msra.mxu0 0
    %320 = vmatprep.subr.bf16.mxu0 0
    %321 = vmatpush1.bf16.msra.mxu0 0
    %322 = vmatprep.subr.bf16.mxu0 0
    %323 = vmatpush1.bf16.msra.mxu0 0
    %324 = vmatprep.subr.bf16.mxu0 0
    %325 = vmatpush1.bf16.msra.mxu0 0
    %326 = vmatprep.mubr.bf16.mxu0 0
    %327 = vmatmul.mubr.bf16.gmra.mrb[0].mxu0 %v222
    %v328 = vpop.f32.mrb[0].mxu0
    %v329 = vadd.f32 %v244, %v328
    %v330 = vpop.f32.mrb[0].mxu0
    %v331 = vpop.f32.mrb[0].mxu0
    %v332 = vadd.f32 %v244, %v331
    %v333 = vpop.f32.mrb[0].mxu0
    %334 = vdwg.mxu0
    %335 = vst [vmem:[#allocation11] sm:$0xff] %v329
    %336 = vst [vmem:[#allocation11 + $0x8] sm:$0xff] %v332
    %v337 = vpack.c.bf16 %v332, %v329
    %v338 = vld [vmem:[#allocation8] sm:$0xf]
    %v339 = vld [vmem:[#allocation8 + $0x4] sm:$0xf]
    %v340 = vld [vmem:[#allocation8 + $0x8] sm:$0xf]
    %v341 = vld [vmem:[#allocation8 + $0xc] sm:$0xf]
    %v342 = vld [vmem:[#allocation8 + $0x10] sm:$0xf]
    %v343 = vld [vmem:[#allocation8 + $0x14] sm:$0xf]
    %v344 = vld [vmem:[#allocation8 + $0x18] sm:$0xf]
    %v345 = vld [vmem:[#allocation8 + $0x1c] sm:$0xf]
    %v346 = vld [vmem:[#allocation8 + $0x20] sm:$0xf]
    %v347 = vld [vmem:[#allocation8 + $0x24] sm:$0xf]
    %v348 = vld [vmem:[#allocation8 + $0x28] sm:$0xf]
    %v349 = vld [vmem:[#allocation8 + $0x2c] sm:$0xf]
    %v350 = vld [vmem:[#allocation8 + $0x30] sm:$0xf]
    %v351 = vld [vmem:[#allocation8 + $0x34] sm:$0xf]
    %v352 = vld [vmem:[#allocation8 + $0x38] sm:$0xf]
    %v353 = vld [vmem:[#allocation8 + $0x3c] sm:$0xf]
    %v354 = vld [vmem:[%s6] sm:$0x1]
    %v356 = vlaneseq
    %v357 = vshrl.u32 %v356, 7
    %v358 = vsub.s32 0, %v357
    %v359 = vrot.slane %v354, %v358
    %v377 = vunpack.c.l.b16 %v338
    %v378 = vunpack.c.l.b16 %v339
    %v379 = vunpack.c.l.b16 %v340
    %v380 = vunpack.c.l.b16 %v341
    %v381 = vunpack.c.l.b16 %v342
    %v382 = vunpack.c.l.b16 %v343
    %v383 = vunpack.c.l.b16 %v344
    %v384 = vunpack.c.l.b16 %v345
    %v385 = vunpack.c.l.b16 %v346
    %v386 = vunpack.c.l.b16 %v347
    %v387 = vunpack.c.l.b16 %v348
    %v388 = vunpack.c.l.b16 %v349
    %v389 = vunpack.c.l.b16 %v350
    %v390 = vunpack.c.l.b16 %v351
    %v391 = vunpack.c.l.b16 %v352
    %v392 = vunpack.c.l.b16 %v353
    %v393 = vpack.c.b16 %v378, %v377
    %v394 = vpack.c.b16 %v380, %v379
    %v395 = vpack.c.b16 %v382, %v381
    %v396 = vpack.c.b16 %v384, %v383
    %v397 = vpack.c.b16 %v386, %v385
    %v398 = vpack.c.b16 %v388, %v387
    %v399 = vpack.c.b16 %v390, %v389
    %v400 = vpack.c.b16 %v392, %v391
    %409 = vmatprep.subr.bf16.mxu0 0
    %410 = vmatpush1.bf16.msra.mxu0 %v393
    %411 = vmatprep.subr.bf16.mxu0 0
    %412 = vmatpush1.bf16.msra.mxu0 %v394
    %413 = vmatprep.subr.bf16.mxu0 0
    %414 = vmatpush1.bf16.msra.mxu0 %v395
    %415 = vmatprep.subr.bf16.mxu0 0
    %416 = vmatpush1.bf16.msra.mxu0 %v396
    %417 = vmatprep.subr.bf16.mxu0 0
    %418 = vmatpush1.bf16.msra.mxu0 %v397
    %419 = vmatprep.subr.bf16.mxu0 0
    %420 = vmatpush1.bf16.msra.mxu0 %v398
    %421 = vmatprep.subr.bf16.mxu0 0
    %422 = vmatpush1.bf16.msra.mxu0 %v399
    %423 = vmatprep.subr.bf16.mxu0 0
    %424 = vmatpush1.bf16.msra.mxu0 %v400
    %425 = vmatprep.subr.bf16.mxu0 0
    %426 = vmatpush1.bf16.msra.mxu0 0
    %427 = vmatprep.subr.bf16.mxu0 0
    %428 = vmatpush1.bf16.msra.mxu0 0
    %429 = vmatprep.subr.bf16.mxu0 0
    %430 = vmatpush1.bf16.msra.mxu0 0
    %431 = vmatprep.subr.bf16.mxu0 0
    %432 = vmatpush1.bf16.msra.mxu0 0
    %433 = vmatprep.subr.bf16.mxu0 0
    %434 = vmatpush1.bf16.msra.mxu0 0
    %435 = vmatprep.subr.bf16.mxu0 0
    %436 = vmatpush1.bf16.msra.mxu0 0
    %437 = vmatprep.subr.bf16.mxu0 0
    %438 = vmatpush1.bf16.msra.mxu0 0
    %439 = vmatprep.subr.bf16.mxu0 0
    %440 = vmatpush1.bf16.msra.mxu0 0
    %441 = vmatprep.mubr.bf16.mxu0 0
    %442 = vmatmul.mubr.bf16.gmra.mrb[0].mxu0 %v337
    %v443 = vpop.f32.mrb[0].mxu0
    %v444 = vadd.f32 %v359, %v443
    %v445 = vpop.f32.mrb[0].mxu0
    %v446 = vpop.f32.mrb[0].mxu0
    %v447 = vadd.f32 %v359, %v446
    %v448 = vpop.f32.mrb[0].mxu0
    %449 = vdwg.mxu0
    %v450 = vtanh.pop %v444
    %v451 = vtanh.pop %v447
    %v452 = vpack.c.bf16 %v451, %v450
    %v453 = vld [vmem:[#allocation10] sm:$0xf]
    %v454 = vld [vmem:[#allocation10 + $0x4] sm:$0xf]
    %v455 = vld [vmem:[#allocation10 + $0x8] sm:$0xf]
    %v456 = vld [vmem:[#allocation10 + $0xc] sm:$0xf]
    %v457 = vld [vmem:[#allocation10 + $0x10] sm:$0xf]
    %v458 = vld [vmem:[#allocation10 + $0x14] sm:$0xf]
    %v459 = vld [vmem:[#allocation10 + $0x18] sm:$0xf]
    %v460 = vld [vmem:[#allocation10 + $0x1c] sm:$0xf]
    %v461 = vld [vmem:[#allocation10 + $0x20] sm:$0xf]
    %v462 = vld [vmem:[#allocation10 + $0x24] sm:$0xf]
    %v463 = vld [vmem:[#allocation10 + $0x28] sm:$0xf]
    %v464 = vld [vmem:[#allocation10 + $0x2c] sm:$0xf]
    %v465 = vld [vmem:[#allocation10 + $0x30] sm:$0xf]
    %v466 = vld [vmem:[#allocation10 + $0x34] sm:$0xf]
    %v467 = vld [vmem:[#allocation10 + $0x38] sm:$0xf]
    %v468 = vld [vmem:[#allocation10 + $0x3c] sm:$0xf]
    %v469 = vld [vmem:[%s8] sm:$0x1]
    %v471 = vlaneseq
    %v472 = vshrl.u32 %v471, 7
    %v473 = vsub.s32 0, %v472
    %v474 = vrot.slane %v469, %v473
    %v492 = vunpack.c.l.b16 %v453
    %v493 = vunpack.c.l.b16 %v454
    %v494 = vunpack.c.l.b16 %v455
    %v495 = vunpack.c.l.b16 %v456
    %v496 = vunpack.c.l.b16 %v457
    %v497 = vunpack.c.l.b16 %v458
    %v498 = vunpack.c.l.b16 %v459
    %v499 = vunpack.c.l.b16 %v460
    %v500 = vunpack.c.l.b16 %v461
    %v501 = vunpack.c.l.b16 %v462
    %v502 = vunpack.c.l.b16 %v463
    %v503 = vunpack.c.l.b16 %v464
    %v504 = vunpack.c.l.b16 %v465
    %v505 = vunpack.c.l.b16 %v466
    %v506 = vunpack.c.l.b16 %v467
    %v507 = vunpack.c.l.b16 %v468
    %v508 = vpack.c.b16 %v493, %v492
    %v509 = vpack.c.b16 %v495, %v494
    %v510 = vpack.c.b16 %v497, %v496
    %v511 = vpack.c.b16 %v499, %v498
    %v512 = vpack.c.b16 %v501, %v500
    %v513 = vpack.c.b16 %v503, %v502
    %v514 = vpack.c.b16 %v505, %v504
    %v515 = vpack.c.b16 %v507, %v506
    %524 = vmatprep.subr.bf16.mxu0 0
    %525 = vmatpush1.bf16.msra.mxu0 %v508
    %526 = vmatprep.subr.bf16.mxu0 0
    %527 = vmatpush1.bf16.msra.mxu0 %v509
    %528 = vmatprep.subr.bf16.mxu0 0
    %529 = vmatpush1.bf16.msra.mxu0 %v510
    %530 = vmatprep.subr.bf16.mxu0 0
    %531 = vmatpush1.bf16.msra.mxu0 %v511
    %532 = vmatprep.subr.bf16.mxu0 0
    %533 = vmatpush1.bf16.msra.mxu0 %v512
    %534 = vmatprep.subr.bf16.mxu0 0
    %535 = vmatpush1.bf16.msra.mxu0 %v513
    %536 = vmatprep.subr.bf16.mxu0 0
    %537 = vmatpush1.bf16.msra.mxu0 %v514
    %538 = vmatprep.subr.bf16.mxu0 0
    %539 = vmatpush1.bf16.msra.mxu0 %v515
    %540 = vmatprep.subr.bf16.mxu0 0
    %541 = vmatpush1.bf16.msra.mxu0 0
    %542 = vmatprep.subr.bf16.mxu0 0
    %543 = vmatpush1.bf16.msra.mxu0 0
    %544 = vmatprep.subr.bf16.mxu0 0
    %545 = vmatpush1.bf16.msra.mxu0 0
    %546 = vmatprep.subr.bf16.mxu0 0
    %547 = vmatpush1.bf16.msra.mxu0 0
    %548 = vmatprep.subr.bf16.mxu0 0
    %549 = vmatpush1.bf16.msra.mxu0 0
    %550 = vmatprep.subr.bf16.mxu0 0
    %551 = vmatpush1.bf16.msra.mxu0 0
    %552 = vmatprep.subr.bf16.mxu0 0
    %553 = vmatpush1.bf16.msra.mxu0 0
    %554 = vmatprep.subr.bf16.mxu0 0
    %555 = vmatpush1.bf16.msra.mxu0 0
    %556 = vmatprep.mubr.bf16.mxu0 0
    %557 = vmatmul.mubr.bf16.gmra.mrb[0].mxu0 %v452
    %v558 = vpop.f32.mrb[0].mxu0
    %v559 = vadd.f32 %v474, %v558
    %v560 = vpop.f32.mrb[0].mxu0
    %v561 = vpop.f32.mrb[0].mxu0
    %v562 = vadd.f32 %v474, %v561
    %v563 = vpop.f32.mrb[0].mxu0
    %564 = vdwg.mxu0
    %565 = vst [vmem:[#allocation12] sm:$0xff] %v559
    %566 = vst [vmem:[#allocation12 + $0x8] sm:$0xff] %v562
    // Predicated region
    $region58: #{tpu_custom_call.1} parent=1 // pred_check
      _
    $region59: #{tpu_custom_call.1} parent=1 // pred_check_branch
      %568 = sbr.rel (0) target = $region61
    $region60: #{tpu_custom_call.1} parent=1 // pred_region
      %s570 = ssub.s32 256, 256
      %571 = vsyncadd [#allocation4], %s570
      %s572 = sshll.u32 [#allocation11], 4
      %s573 = int_to_ptr.vmem [resolvable:$true] %s572
      %578 = dma.vmem_to_hbm [thread:$0]  %s573, 256, %s9, [#allocation4], 128, 128, 8
    $region61: #{tpu_custom_call.1} parent=1 // pred_fallthru
      _
    // Predicated region
    $region62: #{tpu_custom_call.1} parent=1 // pred_check
      _
    $region63: #{tpu_custom_call.1} parent=1 // pred_check_branch
      %580 = sbr.rel (0) target = $region65
    $region64: #{tpu_custom_call.1} parent=1 // pred_region
      %s582 = ssub.s32 256, 256
      %583 = vsyncadd [#allocation13], %s582
      %s584 = sshll.u32 [#allocation12], 4
      %s585 = int_to_ptr.vmem [resolvable:$true] %s584
      %590 = dma.vmem_to_hbm [thread:$0]  %s585, 256, %s10, [#allocation13], 128, 128, 8
    $region65: #{tpu_custom_call.1} parent=1 // pred_fallthru
      _
    // Predicated region
    $region66: #{tpu_custom_call.1} parent=1 // pred_check
      _
    $region67: #{tpu_custom_call.1} parent=1 // pred_check_branch
      %592 = sbr.rel (0) target = $region69
    $region68: #{tpu_custom_call.1} parent=1 // pred_region
      %593 = dma.done [#allocation4], 256
    $region69: #{tpu_custom_call.1} parent=1 // pred_fallthru
      _
    // Predicated region
    $region70: #{tpu_custom_call.1} parent=1 // pred_check
      _
    $region71: #{tpu_custom_call.1} parent=1 // pred_check_branch
      %595 = sbr.rel (0) target = $region73
    $region72: #{tpu_custom_call.1} parent=1 // pred_region
      %596 = dma.done [#allocation13], 256
    $region73: #{tpu_custom_call.1} parent=1 // pred_fallthru
      _
    %597 = vsyncpa [#allocation3], 1
    %598 = vsyncpa [#allocation6], 1
    %599 = vsyncpa [#allocation9], 1
    %600 = vsyncpa [#allocation4], 1
    %601 = vsyncpa [#allocation13], 1

</llo_original>
